<compile_context>
chip_gen: v7x
topology: tpu7x:2x2x1
jax: 0.10.0
libtpu: 0.0.40
codegen_flags: <defaults>
</compile_context>

<pallas_src>
import jax
import jax.numpy as jnp
from jax.experimental import pallas as pl
from jax.experimental.pallas import tpu as pltpu


def critic_kernel(oa_ref,                                              # (TB, D) f32
                  w1a_ref, b1a_ref, g1_ref, be1_ref,                   # head 1
                  w2a_ref, b2a_ref, w3a_ref, b3a_ref,
                  w1b_ref, b1b_ref, g2_ref, be2_ref,                   # head 2
                  w2b_ref, b2b_ref, w3b_ref, b3b_ref,
                  q1_ref, q2_ref):                                     # (TB, 1) f32
    x = oa_ref[...].astype(jnp.bfloat16)

    def q_head(w1, b1, g, be, w2, b2, w3, b3):
        # Linear 1 (bf16 MXU, f32 accumulate)
        h = jnp.dot(x, w1[...], preferred_element_type=jnp.float32) + b1[...]

        # LayerNorm (torch default eps=1e-5), one-pass stats
        mean = jnp.mean(h, axis=-1, keepdims=True)
        msq = jnp.mean(h * h, axis=-1, keepdims=True)
        var = jnp.maximum(msq - mean * mean, 0.0)
        h = (h - mean) * jax.lax.rsqrt(var + 1e-5)
        h = h * g[...] + be[...]

        # Tanh
        h = jnp.tanh(h)

        # Linear 2 + ReLU
        h = jnp.dot(h.astype(jnp.bfloat16), w2[...],
                    preferred_element_type=jnp.float32) + b2[...]
        h = jnp.maximum(h, 0.0)

        # Linear 3 -> scalar q
        q = jnp.dot(h.astype(jnp.bfloat16), w3[...],
                    preferred_element_type=jnp.float32) + b3[...]
        return q

    q1_ref[...] = q_head(w1a_ref, b1a_ref, g1_ref, be1_ref,
                         w2a_ref, b2a_ref, w3a_ref, b3a_ref).astype(q1_ref.dtype)
    q2_ref[...] = q_head(w1b_ref, b1b_ref, g2_ref, be2_ref,
                         w2b_ref, b2b_ref, w3b_ref, b3b_ref).astype(q2_ref.dtype)


def _pick_batch_tile(B):
    for tb in (512, 256, 128, 64, 32, 16, 8):
        if B % tb == 0:
            return tb
    return B  # small / ragged batch: single block (full-extent -> no (8,128) rule)


_PARAM_KEYS = [
    "q1_w1", "q1_b1", "q1_ln_g", "q1_ln_b", "q1_w2", "q1_b2", "q1_w3", "q1_b3",
    "q2_w1", "q2_b1", "q2_ln_g", "q2_ln_b", "q2_w2", "q2_b2", "q2_w3", "q2_b3",
]


def critic_forward(obs, action, params):
    """Fused TD3 Critic forward. Returns (q1, q2), each (B, 1) float32."""
    oa = jnp.concatenate([obs.astype(jnp.float32), action.astype(jnp.float32)],
                         axis=-1)
    B, D = oa.shape
    H = params["q1_w1"].shape[1]

    TB = _pick_batch_tile(B)
    grid = (B // TB,)

    def resident(shape):
        # Weight / bias / LN param: same block for every grid step (VMEM-resident).
        return pl.BlockSpec(shape, lambda i: (0,) * len(shape))

    param_list = [params[k] for k in _PARAM_KEYS]

    in_specs = [pl.BlockSpec((TB, D), lambda i: (i, 0))] + \
               [resident(p.shape) for p in param_list]
    out_specs = (pl.BlockSpec((TB, 1), lambda i: (i, 0)),
                 pl.BlockSpec((TB, 1), lambda i: (i, 0)))

    # Advisory cost estimate: 2 heads x (D*H + H*H + H*1) MACs per row.
    flops = 2 * 2 * B * (D * H + H * H + H)
    transcendentals = 2 * B * H          # tanh on (B, H) per head
    bytes_weights = sum(int(p.size) * p.dtype.itemsize for p in param_list)
    bytes_accessed = bytes_weights + oa.size * 4 + 2 * B * 4

    q1, q2 = pl.pallas_call(
        critic_kernel,
        out_shape=(jax.ShapeDtypeStruct((B, 1), jnp.float32),
                   jax.ShapeDtypeStruct((B, 1), jnp.float32)),
        grid=grid,
        in_specs=in_specs,
        out_specs=out_specs,
        compiler_params=pltpu.CompilerParams(
            dimension_semantics=("parallel",)),
        cost_estimate=pl.CostEstimate(flops=flops,
                                      transcendentals=transcendentals,
                                      bytes_accessed=bytes_accessed),
    )(oa, *param_list)
    return q1, q2


def _orthogonal(key, shape):
    n = max(shape)
    a = jax.random.normal(key, (n, n), jnp.float32)
    q, r = jnp.linalg.qr(a)
    q = q * jnp.sign(jnp.diag(r))[None, :]
    return q[: shape[0], : shape[1]]


def _init_head(key, in_dim, hidden_dim, prefix):
    k1, k2, k3, kb = jax.random.split(key, 4)
    kb1, kb2, kb3, kg, kbe = jax.random.split(kb, 5)
    return {
        # Linear weights stored (in, out) in bf16; torch stores (out, in) f32.
        prefix + "_w1": _orthogonal(k1, (in_dim, hidden_dim)).astype(jnp.bfloat16),
        prefix + "_b1": 0.05 * jax.random.normal(kb1, (1, hidden_dim), jnp.float32),
        prefix + "_ln_g": 1.0 + 0.05 * jax.random.normal(kg, (1, hidden_dim), jnp.float32),
        prefix + "_ln_b": 0.05 * jax.random.normal(kbe, (1, hidden_dim), jnp.float32),
        prefix + "_w2": _orthogonal(k2, (hidden_dim, hidden_dim)).astype(jnp.bfloat16),
        prefix + "_b2": 0.05 * jax.random.normal(kb2, (1, hidden_dim), jnp.float32),
        prefix + "_w3": _orthogonal(k3, (hidden_dim, 1)).astype(jnp.bfloat16),
        prefix + "_b3": 0.05 * jax.random.normal(kb3, (1, 1), jnp.float32),
    }


def init_critic_params(key, obs_dim, action_dim, hidden_dim):
    k1, k2 = jax.random.split(key)
    p = {}
    p.update(_init_head(k1, obs_dim + action_dim, hidden_dim, "q1"))
    p.update(_init_head(k2, obs_dim + action_dim, hidden_dim, "q2"))
    return p


def critic_forward_ref(obs, action, p):
    """Pure-JAX reference using the same bf16-matmul / f32-accumulate recipe."""
    oa = jnp.concatenate([obs, action], axis=-1).astype(jnp.float32)

    def head(prefix):
        h = jnp.dot(oa.astype(jnp.bfloat16), p[prefix + "_w1"],
                    preferred_element_type=jnp.float32) + p[prefix + "_b1"]
        mean = jnp.mean(h, axis=-1, keepdims=True)
        var = jnp.mean((h - mean) ** 2, axis=-1, keepdims=True)
        h = (h - mean) / jnp.sqrt(var + 1e-5) * p[prefix + "_ln_g"] + p[prefix + "_ln_b"]
        h = jnp.tanh(h)
        h = jnp.maximum(jnp.dot(h.astype(jnp.bfloat16), p[prefix + "_w2"],
                                preferred_element_type=jnp.float32) + p[prefix + "_b2"],
                        0.0)
        q = jnp.dot(h.astype(jnp.bfloat16), p[prefix + "_w3"],
                    preferred_element_type=jnp.float32) + p[prefix + "_b3"]
        return q

    return head("q1"), head("q2")


if __name__ == "__main__":
    key = jax.random.PRNGKey(0)
    k_obs, k_act, k_par = jax.random.split(key, 3)

    B, OBS_DIM, ACTION_DIM, HIDDEN_DIM = 16, 24, 8, 128  # lane-dense hidden
    obs = jax.random.normal(k_obs, (B, OBS_DIM), jnp.float32)
    action = jnp.tanh(jax.random.normal(k_act, (B, ACTION_DIM), jnp.float32))

    params = init_critic_params(k_par, OBS_DIM, ACTION_DIM, HIDDEN_DIM)

    q1, q2 = critic_forward(obs, action, params)
    jax.block_until_ready((q1, q2))

    q1_ref, q2_ref = critic_forward_ref(obs, action, params)
    assert q1.shape == (B, 1) and q2.shape == (B, 1)
    assert jnp.allclose(q1, q1_ref, atol=1e-3, rtol=1e-3)
    assert jnp.allclose(q2, q2_ref, atol=1e-3, rtol=1e-3)

    print("KERNEL_OK")
</pallas_src>

<mosaic_0001>
module attributes {stable_mosaic.version = 11 : i64} {
  func.func @critic_kernel(%arg0: i32, %arg1: memref<16x32xf32, #tpu.memory_space<vmem>>, %arg2: memref<32x128xbf16, #tpu.memory_space<vmem>>, %arg3: memref<1x128xf32, #tpu.memory_space<vmem>>, %arg4: memref<1x128xf32, #tpu.memory_space<vmem>>, %arg5: memref<1x128xf32, #tpu.memory_space<vmem>>, %arg6: memref<128x128xbf16, #tpu.memory_space<vmem>>, %arg7: memref<1x128xf32, #tpu.memory_space<vmem>>, %arg8: memref<128x1xbf16, #tpu.memory_space<vmem>>, %arg9: memref<1x1xf32, #tpu.memory_space<vmem>>, %arg10: memref<32x128xbf16, #tpu.memory_space<vmem>>, %arg11: memref<1x128xf32, #tpu.memory_space<vmem>>, %arg12: memref<1x128xf32, #tpu.memory_space<vmem>>, %arg13: memref<1x128xf32, #tpu.memory_space<vmem>>, %arg14: memref<128x128xbf16, #tpu.memory_space<vmem>>, %arg15: memref<1x128xf32, #tpu.memory_space<vmem>>, %arg16: memref<128x1xbf16, #tpu.memory_space<vmem>>, %arg17: memref<1x1xf32, #tpu.memory_space<vmem>>, %arg18: memref<16x1xf32, #tpu.memory_space<vmem>>, %arg19: memref<16x1xf32, #tpu.memory_space<vmem>>) attributes {dimension_semantics = [#tpu.dimension_semantics<parallel>], iteration_bounds = array<i64: 1>, scalar_prefetch = 0 : i64, scratch_operands = 0 : i64, tpu.core_type = #tpu.core_type<tc>, window_params = [{transform_indices = @transform_0, window_bounds = array<i64: 16, 32>}, {pipeline_mode = #tpu.pipeline_mode<synchronous>, transform_indices = @transform_1, window_bounds = array<i64: 32, 128>}, {pipeline_mode = #tpu.pipeline_mode<synchronous>, transform_indices = @transform_2, window_bounds = array<i64: 1, 128>}, {pipeline_mode = #tpu.pipeline_mode<synchronous>, transform_indices = @transform_3, window_bounds = array<i64: 1, 128>}, {pipeline_mode = #tpu.pipeline_mode<synchronous>, transform_indices = @transform_4, window_bounds = array<i64: 1, 128>}, {pipeline_mode = #tpu.pipeline_mode<synchronous>, transform_indices = @transform_5, window_bounds = array<i64: 128, 128>}, {pipeline_mode = #tpu.pipeline_mode<synchronous>, transform_indices = @transform_6, window_bounds = array<i64: 1, 128>}, {pipeline_mode = #tpu.pipeline_mode<synchronous>, transform_indices = @transform_7, window_bounds = array<i64: 128, 1>}, {pipeline_mode = #tpu.pipeline_mode<synchronous>, transform_indices = @transform_8, window_bounds = array<i64: 1, 1>}, {pipeline_mode = #tpu.pipeline_mode<synchronous>, transform_indices = @transform_9, window_bounds = array<i64: 32, 128>}, {pipeline_mode = #tpu.pipeline_mode<synchronous>, transform_indices = @transform_10, window_bounds = array<i64: 1, 128>}, {pipeline_mode = #tpu.pipeline_mode<synchronous>, transform_indices = @transform_11, window_bounds = array<i64: 1, 128>}, {pipeline_mode = #tpu.pipeline_mode<synchronous>, transform_indices = @transform_12, window_bounds = array<i64: 1, 128>}, {pipeline_mode = #tpu.pipeline_mode<synchronous>, transform_indices = @transform_13, window_bounds = array<i64: 128, 128>}, {pipeline_mode = #tpu.pipeline_mode<synchronous>, transform_indices = @transform_14, window_bounds = array<i64: 1, 128>}, {pipeline_mode = #tpu.pipeline_mode<synchronous>, transform_indices = @transform_15, window_bounds = array<i64: 128, 1>}, {pipeline_mode = #tpu.pipeline_mode<synchronous>, transform_indices = @transform_16, window_bounds = array<i64: 1, 1>}, {transform_indices = @transform_17, window_bounds = array<i64: 16, 1>}, {transform_indices = @transform_18, window_bounds = array<i64: 16, 1>}]} {
    %c0 = arith.constant 0 : index
    %c0_0 = arith.constant 0 : index
    %0 = vector.load %arg1[%c0, %c0_0] : memref<16x32xf32, #tpu.memory_space<vmem>>, vector<16x32xf32>
    %1 = arith.truncf %0 : vector<16x32xf32> to vector<16x32xbf16>
    %c0_1 = arith.constant 0 : index
    %c0_2 = arith.constant 0 : index
    %2 = vector.load %arg2[%c0_1, %c0_2] : memref<32x128xbf16, #tpu.memory_space<vmem>>, vector<32x128xbf16>
    %cst = arith.constant dense<0.000000e+00> : vector<16x128xf32>
    %3 = tpu.matmul %1, %2, %cst {dimension_numbers = #tpu.dot_dimension_numbers<[1], [0], [0], [1], [0, 0, 1, 1], [], []>} : vector<16x32xbf16>, vector<32x128xbf16>, vector<16x128xf32> -> vector<16x128xf32>
    %c0_3 = arith.constant 0 : index
    %c0_4 = arith.constant 0 : index
    %4 = vector.load %arg3[%c0_3, %c0_4] : memref<1x128xf32, #tpu.memory_space<vmem>>, vector<1x128xf32>
    %5 = vector.broadcast %4 : vector<1x128xf32> to vector<16x128xf32>
    %6 = arith.addf %3, %5 : vector<16x128xf32>
    %cst_5 = arith.constant dense<0.000000e+00> : vector<16xf32>
    %7 = vector.multi_reduction <add>, %6, %cst_5 [1] : vector<16x128xf32> to vector<16xf32>
    %8 = vector.shape_cast %7 : vector<16xf32> to vector<16x1xf32>
    %cst_6 = arith.constant 1.280000e+02 : f32
    %9 = vector.broadcast %cst_6 : f32 to vector<16x1xf32>
    %10 = arith.divf %8, %9 : vector<16x1xf32>
    %11 = arith.mulf %6, %6 : vector<16x128xf32>
    %cst_7 = arith.constant dense<0.000000e+00> : vector<16xf32>
    %12 = vector.multi_reduction <add>, %11, %cst_7 [1] : vector<16x128xf32> to vector<16xf32>
    %13 = vector.shape_cast %12 : vector<16xf32> to vector<16x1xf32>
    %cst_8 = arith.constant 1.280000e+02 : f32
    %14 = vector.broadcast %cst_8 : f32 to vector<16x1xf32>
    %15 = arith.divf %13, %14 : vector<16x1xf32>
    %16 = arith.mulf %10, %10 : vector<16x1xf32>
    %17 = arith.subf %15, %16 : vector<16x1xf32>
    %cst_9 = arith.constant 0.000000e+00 : f32
    %18 = vector.broadcast %cst_9 : f32 to vector<16x1xf32>
    %19 = arith.maximumf %17, %18 : vector<16x1xf32>
    %20 = vector.broadcast %10 : vector<16x1xf32> to vector<16x128xf32>
    %21 = arith.subf %6, %20 : vector<16x128xf32>
    %cst_10 = arith.constant 9.99999974E-6 : f32
    %22 = vector.broadcast %cst_10 : f32 to vector<16x1xf32>
    %23 = arith.addf %19, %22 : vector<16x1xf32>
    %24 = math.rsqrt %23 : vector<16x1xf32>
    %25 = vector.broadcast %24 : vector<16x1xf32> to vector<16x128xf32>
    %26 = arith.mulf %21, %25 : vector<16x128xf32>
    %c0_11 = arith.constant 0 : index
    %c0_12 = arith.constant 0 : index
    %27 = vector.load %arg4[%c0_11, %c0_12] : memref<1x128xf32, #tpu.memory_space<vmem>>, vector<1x128xf32>
    %28 = vector.broadcast %27 : vector<1x128xf32> to vector<16x128xf32>
    %29 = arith.mulf %26, %28 : vector<16x128xf32>
    %c0_13 = arith.constant 0 : index
    %c0_14 = arith.constant 0 : index
    %30 = vector.load %arg5[%c0_13, %c0_14] : memref<1x128xf32, #tpu.memory_space<vmem>>, vector<1x128xf32>
    %31 = vector.broadcast %30 : vector<1x128xf32> to vector<16x128xf32>
    %32 = arith.addf %29, %31 : vector<16x128xf32>
    %33 = math.tanh %32 : vector<16x128xf32>
    %34 = arith.truncf %33 : vector<16x128xf32> to vector<16x128xbf16>
    %c0_15 = arith.constant 0 : index
    %c0_16 = arith.constant 0 : index
    %35 = vector.load %arg6[%c0_15, %c0_16] : memref<128x128xbf16, #tpu.memory_space<vmem>>, vector<128x128xbf16>
    %cst_17 = arith.constant dense<0.000000e+00> : vector<16x128xf32>
    %36 = tpu.matmul %34, %35, %cst_17 {dimension_numbers = #tpu.dot_dimension_numbers<[1], [0], [0], [1], [0, 0, 1, 1], [], []>} : vector<16x128xbf16>, vector<128x128xbf16>, vector<16x128xf32> -> vector<16x128xf32>
    %c0_18 = arith.constant 0 : index
    %c0_19 = arith.constant 0 : index
    %37 = vector.load %arg7[%c0_18, %c0_19] : memref<1x128xf32, #tpu.memory_space<vmem>>, vector<1x128xf32>
    %38 = vector.broadcast %37 : vector<1x128xf32> to vector<16x128xf32>
    %39 = arith.addf %36, %38 : vector<16x128xf32>
    %cst_20 = arith.constant 0.000000e+00 : f32
    %40 = vector.broadcast %cst_20 : f32 to vector<16x128xf32>
    %41 = arith.maximumf %39, %40 : vector<16x128xf32>
    %42 = arith.truncf %41 : vector<16x128xf32> to vector<16x128xbf16>
    %c0_21 = arith.constant 0 : index
    %c0_22 = arith.constant 0 : index
    %43 = vector.load %arg8[%c0_21, %c0_22] : memref<128x1xbf16, #tpu.memory_space<vmem>>, vector<128x1xbf16>
    %cst_23 = arith.constant dense<0.000000e+00> : vector<16x1xf32>
    %44 = tpu.matmul %42, %43, %cst_23 {dimension_numbers = #tpu.dot_dimension_numbers<[1], [0], [0], [1], [0, 0, 1, 1], [], []>} : vector<16x128xbf16>, vector<128x1xbf16>, vector<16x1xf32> -> vector<16x1xf32>
    %c0_24 = arith.constant 0 : index
    %c0_25 = arith.constant 0 : index
    %45 = vector.load %arg9[%c0_24, %c0_25] : memref<1x1xf32, #tpu.memory_space<vmem>>, vector<1x1xf32>
    %46 = vector.broadcast %45 : vector<1x1xf32> to vector<16x1xf32>
    %47 = arith.addf %44, %46 : vector<16x1xf32>
    %c0_26 = arith.constant 0 : index
    %c0_27 = arith.constant 0 : index
    %48 = vector.load %arg18[%c0_26, %c0_27] : memref<16x1xf32, #tpu.memory_space<vmem>>, vector<16x1xf32>
    tpu.vector_store %arg18[%c0_26, %c0_27], %47 {strides = array<i32>} : memref<16x1xf32, #tpu.memory_space<vmem>>, vector<16x1xf32>,
    %c0_28 = arith.constant 0 : index
    %c0_29 = arith.constant 0 : index
    %49 = vector.load %arg10[%c0_28, %c0_29] : memref<32x128xbf16, #tpu.memory_space<vmem>>, vector<32x128xbf16>
    %cst_30 = arith.constant dense<0.000000e+00> : vector<16x128xf32>
    %50 = tpu.matmul %1, %49, %cst_30 {dimension_numbers = #tpu.dot_dimension_numbers<[1], [0], [0], [1], [0, 0, 1, 1], [], []>} : vector<16x32xbf16>, vector<32x128xbf16>, vector<16x128xf32> -> vector<16x128xf32>
    %c0_31 = arith.constant 0 : index
    %c0_32 = arith.constant 0 : index
    %51 = vector.load %arg11[%c0_31, %c0_32] : memref<1x128xf32, #tpu.memory_space<vmem>>, vector<1x128xf32>
    %52 = vector.broadcast %51 : vector<1x128xf32> to vector<16x128xf32>
    %53 = arith.addf %50, %52 : vector<16x128xf32>
    %cst_33 = arith.constant dense<0.000000e+00> : vector<16xf32>
    %54 = vector.multi_reduction <add>, %53, %cst_33 [1] : vector<16x128xf32> to vector<16xf32>
    %55 = vector.shape_cast %54 : vector<16xf32> to vector<16x1xf32>
    %cst_34 = arith.constant 1.280000e+02 : f32
    %56 = vector.broadcast %cst_34 : f32 to vector<16x1xf32>
    %57 = arith.divf %55, %56 : vector<16x1xf32>
    %58 = arith.mulf %53, %53 : vector<16x128xf32>
    %cst_35 = arith.constant dense<0.000000e+00> : vector<16xf32>
    %59 = vector.multi_reduction <add>, %58, %cst_35 [1] : vector<16x128xf32> to vector<16xf32>
    %60 = vector.shape_cast %59 : vector<16xf32> to vector<16x1xf32>
    %cst_36 = arith.constant 1.280000e+02 : f32
    %61 = vector.broadcast %cst_36 : f32 to vector<16x1xf32>
    %62 = arith.divf %60, %61 : vector<16x1xf32>
    %63 = arith.mulf %57, %57 : vector<16x1xf32>
    %64 = arith.subf %62, %63 : vector<16x1xf32>
    %cst_37 = arith.constant 0.000000e+00 : f32
    %65 = vector.broadcast %cst_37 : f32 to vector<16x1xf32>
    %66 = arith.maximumf %64, %65 : vector<16x1xf32>
    %67 = vector.broadcast %57 : vector<16x1xf32> to vector<16x128xf32>
    %68 = arith.subf %53, %67 : vector<16x128xf32>
    %cst_38 = arith.constant 9.99999974E-6 : f32
    %69 = vector.broadcast %cst_38 : f32 to vector<16x1xf32>
    %70 = arith.addf %66, %69 : vector<16x1xf32>
    %71 = math.rsqrt %70 : vector<16x1xf32>
    %72 = vector.broadcast %71 : vector<16x1xf32> to vector<16x128xf32>
    %73 = arith.mulf %68, %72 : vector<16x128xf32>
    %c0_39 = arith.constant 0 : index
    %c0_40 = arith.constant 0 : index
    %74 = vector.load %arg12[%c0_39, %c0_40] : memref<1x128xf32, #tpu.memory_space<vmem>>, vector<1x128xf32>
    %75 = vector.broadcast %74 : vector<1x128xf32> to vector<16x128xf32>
    %76 = arith.mulf %73, %75 : vector<16x128xf32>
    %c0_41 = arith.constant 0 : index
    %c0_42 = arith.constant 0 : index
    %77 = vector.load %arg13[%c0_41, %c0_42] : memref<1x128xf32, #tpu.memory_space<vmem>>, vector<1x128xf32>
    %78 = vector.broadcast %77 : vector<1x128xf32> to vector<16x128xf32>
    %79 = arith.addf %76, %78 : vector<16x128xf32>
    %80 = math.tanh %79 : vector<16x128xf32>
    %81 = arith.truncf %80 : vector<16x128xf32> to vector<16x128xbf16>
    %c0_43 = arith.constant 0 : index
    %c0_44 = arith.constant 0 : index
    %82 = vector.load %arg14[%c0_43, %c0_44] : memref<128x128xbf16, #tpu.memory_space<vmem>>, vector<128x128xbf16>
    %cst_45 = arith.constant dense<0.000000e+00> : vector<16x128xf32>
    %83 = tpu.matmul %81, %82, %cst_45 {dimension_numbers = #tpu.dot_dimension_numbers<[1], [0], [0], [1], [0, 0, 1, 1], [], []>} : vector<16x128xbf16>, vector<128x128xbf16>, vector<16x128xf32> -> vector<16x128xf32>
    %c0_46 = arith.constant 0 : index
    %c0_47 = arith.constant 0 : index
    %84 = vector.load %arg15[%c0_46, %c0_47] : memref<1x128xf32, #tpu.memory_space<vmem>>, vector<1x128xf32>
    %85 = vector.broadcast %84 : vector<1x128xf32> to vector<16x128xf32>
    %86 = arith.addf %83, %85 : vector<16x128xf32>
    %cst_48 = arith.constant 0.000000e+00 : f32
    %87 = vector.broadcast %cst_48 : f32 to vector<16x128xf32>
    %88 = arith.maximumf %86, %87 : vector<16x128xf32>
    %89 = arith.truncf %88 : vector<16x128xf32> to vector<16x128xbf16>
    %c0_49 = arith.constant 0 : index
    %c0_50 = arith.constant 0 : index
    %90 = vector.load %arg16[%c0_49, %c0_50] : memref<128x1xbf16, #tpu.memory_space<vmem>>, vector<128x1xbf16>
    %cst_51 = arith.constant dense<0.000000e+00> : vector<16x1xf32>
    %91 = tpu.matmul %89, %90, %cst_51 {dimension_numbers = #tpu.dot_dimension_numbers<[1], [0], [0], [1], [0, 0, 1, 1], [], []>} : vector<16x128xbf16>, vector<128x1xbf16>, vector<16x1xf32> -> vector<16x1xf32>
    %c0_52 = arith.constant 0 : index
    %c0_53 = arith.constant 0 : index
    %92 = vector.load %arg17[%c0_52, %c0_53] : memref<1x1xf32, #tpu.memory_space<vmem>>, vector<1x1xf32>
    %93 = vector.broadcast %92 : vector<1x1xf32> to vector<16x1xf32>
    %94 = arith.addf %91, %93 : vector<16x1xf32>
    %c0_54 = arith.constant 0 : index
    %c0_55 = arith.constant 0 : index
    %95 = vector.load %arg19[%c0_54, %c0_55] : memref<16x1xf32, #tpu.memory_space<vmem>>, vector<16x1xf32>
    tpu.vector_store %arg19[%c0_54, %c0_55], %94 {strides = array<i32>} : memref<16x1xf32, #tpu.memory_space<vmem>>, vector<16x1xf32>,
    return
  }
  func.func @transform_0(%arg0: i32) -> (i32, i32) {
    %c0_i32 = arith.constant 0 : i32
    %c0_i32_0 = arith.constant 0 : i32
    return %arg0, %c0_i32 : i32, i32
  }
  func.func @transform_1(%arg0: i32) -> (i32, i32) {
    %c0_i32 = arith.constant 0 : i32
    %c0_i32_0 = arith.constant 0 : i32
    %c0_i32_1 = arith.constant 0 : i32
    return %c0_i32, %c0_i32_0 : i32, i32
  }
  func.func @transform_2(%arg0: i32) -> (i32, i32) {
    %c0_i32 = arith.constant 0 : i32
    %c0_i32_0 = arith.constant 0 : i32
    %c0_i32_1 = arith.constant 0 : i32
    return %c0_i32, %c0_i32_0 : i32, i32
  }
  func.func @transform_3(%arg0: i32) -> (i32, i32) {
    %c0_i32 = arith.constant 0 : i32
    %c0_i32_0 = arith.constant 0 : i32
    %c0_i32_1 = arith.constant 0 : i32
    return %c0_i32, %c0_i32_0 : i32, i32
  }
  func.func @transform_4(%arg0: i32) -> (i32, i32) {
    %c0_i32 = arith.constant 0 : i32
    %c0_i32_0 = arith.constant 0 : i32
    %c0_i32_1 = arith.constant 0 : i32
    return %c0_i32, %c0_i32_0 : i32, i32
  }
  func.func @transform_5(%arg0: i32) -> (i32, i32) {
    %c0_i32 = arith.constant 0 : i32
    %c0_i32_0 = arith.constant 0 : i32
    %c0_i32_1 = arith.constant 0 : i32
    return %c0_i32, %c0_i32_0 : i32, i32
  }
  func.func @transform_6(%arg0: i32) -> (i32, i32) {
    %c0_i32 = arith.constant 0 : i32
    %c0_i32_0 = arith.constant 0 : i32
    %c0_i32_1 = arith.constant 0 : i32
    return %c0_i32, %c0_i32_0 : i32, i32
  }
  func.func @transform_7(%arg0: i32) -> (i32, i32) {
    %c0_i32 = arith.constant 0 : i32
    %c0_i32_0 = arith.constant 0 : i32
    %c0_i32_1 = arith.constant 0 : i32
    return %c0_i32, %c0_i32_0 : i32, i32
  }
  func.func @transform_8(%arg0: i32) -> (i32, i32) {
    %c0_i32 = arith.constant 0 : i32
    %c0_i32_0 = arith.constant 0 : i32
    %c0_i32_1 = arith.constant 0 : i32
    return %c0_i32, %c0_i32_0 : i32, i32
  }
  func.func @transform_9(%arg0: i32) -> (i32, i32) {
    %c0_i32 = arith.constant 0 : i32
    %c0_i32_0 = arith.constant 0 : i32
    %c0_i32_1 = arith.constant 0 : i32
    return %c0_i32, %c0_i32_0 : i32, i32
  }
  func.func @transform_10(%arg0: i32) -> (i32, i32) {
    %c0_i32 = arith.constant 0 : i32
    %c0_i32_0 = arith.constant 0 : i32
    %c0_i32_1 = arith.constant 0 : i32
    return %c0_i32, %c0_i32_0 : i32, i32
  }
  func.func @transform_11(%arg0: i32) -> (i32, i32) {
    %c0_i32 = arith.constant 0 : i32
    %c0_i32_0 = arith.constant 0 : i32
    %c0_i32_1 = arith.constant 0 : i32
    return %c0_i32, %c0_i32_0 : i32, i32
  }
  func.func @transform_12(%arg0: i32) -> (i32, i32) {
    %c0_i32 = arith.constant 0 : i32
    %c0_i32_0 = arith.constant 0 : i32
    %c0_i32_1 = arith.constant 0 : i32
    return %c0_i32, %c0_i32_0 : i32, i32
  }
  func.func @transform_13(%arg0: i32) -> (i32, i32) {
    %c0_i32 = arith.constant 0 : i32
    %c0_i32_0 = arith.constant 0 : i32
    %c0_i32_1 = arith.constant 0 : i32
    return %c0_i32, %c0_i32_0 : i32, i32
  }
  func.func @transform_14(%arg0: i32) -> (i32, i32) {
    %c0_i32 = arith.constant 0 : i32
    %c0_i32_0 = arith.constant 0 : i32
    %c0_i32_1 = arith.constant 0 : i32
    return %c0_i32, %c0_i32_0 : i32, i32
  }
  func.func @transform_15(%arg0: i32) -> (i32, i32) {
    %c0_i32 = arith.constant 0 : i32
    %c0_i32_0 = arith.constant 0 : i32
    %c0_i32_1 = arith.constant 0 : i32
    return %c0_i32, %c0_i32_0 : i32, i32
  }
  func.func @transform_16(%arg0: i32) -> (i32, i32) {
    %c0_i32 = arith.constant 0 : i32
    %c0_i32_0 = arith.constant 0 : i32
    %c0_i32_1 = arith.constant 0 : i32
    return %c0_i32, %c0_i32_0 : i32, i32
  }
  func.func @transform_17(%arg0: i32) -> (i32, i32) {
    %c0_i32 = arith.constant 0 : i32
    %c0_i32_0 = arith.constant 0 : i32
    return %arg0, %c0_i32 : i32, i32
  }
  func.func @transform_18(%arg0: i32) -> (i32, i32) {
    %c0_i32 = arith.constant 0 : i32
    %c0_i32_0 = arith.constant 0 : i32
    return %arg0, %c0_i32 : i32, i32
  }
}

</mosaic_0001>

<llo_original>
// kernel: tpu_custom_call.1
$region0: #{tpu_custom_call.1}
  #allocation0 [shape = 'u32[]', space=smem, size = 0x4, offset = 0x4, fixed_abs, tag = 'smem constant byte address 0x4 - core index']
  #allocation1 [shape = 'u32[144,128]{1,0:T(1,128)}', space=vmem, size = 0x12000, scoped, tag = 'internal scratch']
  #allocation2 [shape = 'f32[1,1]{1,0:T(1,128)S(1)}', space=vmem, size = 0x200, scoped, tag = 'scoped memory for tpu_custom_call.1']
  #allocation3 [shape = 'f32[1,1]{1,0:T(1,128)S(1)}', space=vmem, size = 0x200, scoped, tag = 'scoped memory for tpu_custom_call.1']
  %s0 = inlined_call_operand.hbm [shape: f32[16,32], index: 0, kind: input, shape index: {}]
  %s1 = inlined_call_operand.hbm [shape: bf16[32,128], index: 1, kind: input, shape index: {}]
  %s2 = inlined_call_operand.hbm [shape: f32[1,128], index: 2, kind: input, shape index: {}]
  %s3 = inlined_call_operand.vmem [shape: f32[1,128], index: 3, kind: input, shape index: {}]
  %s4 = inlined_call_operand.vmem [shape: f32[1,128], index: 4, kind: input, shape index: {}]
  %s5 = inlined_call_operand.vmem [shape: bf16[128,128], index: 5, kind: input, shape index: {}]
  %s6 = inlined_call_operand.vmem [shape: f32[1,128], index: 6, kind: input, shape index: {}]
  %s7 = inlined_call_operand.vmem [shape: bf16[128,1], index: 7, kind: input, shape index: {}]
  %s8 = inlined_call_operand.<no memory space> [shape: f32[1,1], index: 8, kind: input, shape index: {}]
  %s9 = inlined_call_operand.vmem [shape: bf16[32,128], index: 9, kind: input, shape index: {}]
  %s10 = inlined_call_operand.vmem [shape: f32[1,128], index: 10, kind: input, shape index: {}]
  %s11 = inlined_call_operand.vmem [shape: f32[1,128], index: 11, kind: input, shape index: {}]
  %s12 = inlined_call_operand.vmem [shape: f32[1,128], index: 12, kind: input, shape index: {}]
  %s13 = inlined_call_operand.vmem [shape: bf16[128,128], index: 13, kind: input, shape index: {}]
  %s14 = inlined_call_operand.vmem [shape: f32[1,128], index: 14, kind: input, shape index: {}]
  %s15 = inlined_call_operand.vmem [shape: bf16[128,1], index: 15, kind: input, shape index: {}]
  %s16 = inlined_call_operand.<no memory space> [shape: f32[1,1], index: 16, kind: input, shape index: {}]
  %s17 = inlined_call_operand.vmem [shape: f32[16,1], index: 17, kind: output, shape index: {0}]
  %s18 = inlined_call_operand.vmem [shape: f32[16,1], index: 18, kind: output, shape index: {1}]
  %19 = xla_tuple %s17, %s18
  %s20 = sld [smem:[#allocation0]]
  $region98: #{tpu_custom_call.1} parent=0
    _
  %s22 = ssub.s32 1, %s20
  %s23 = scalar_select 0, %s22, %s20
  %v24 = vstv %s8
  %25 = vst [vmem:[#allocation2] sm:$0x1] %v24
  %v26 = vstv %s16
  %27 = vst [vmem:[#allocation3] sm:$0x1] %v26
  $region1: #{tpu_custom_call.1} parent=0
    #allocation4 [shape = 'u8[8192]{0}', space=vmem, size = 0x2000, scoped, tag = 'input window, operand 0, single buffered']
    #allocation5 [shape = 's32[1]{0}', space=sflag, size = 0x4, scoped, tag = 'scoped memory for tpu_custom_call.1']
    #allocation6 [shape = 'u8[8192]{0}', space=vmem, size = 0x2000, scoped, tag = 'input window, operand 1, single buffered']
    #allocation7 [shape = 's32[1]{0}', space=sflag, size = 0x4, scoped, tag = 'scoped memory for tpu_custom_call.1']
    #allocation8 [shape = 'u8[512]{0}', space=vmem, size = 0x400, scoped, tag = 'input window, operand 2, single buffered']
    %28 = vsyncpa [#allocation5], 0
    %29 = vsyncpa [#allocation7], 0
    // Predicated region
    $region2: #{tpu_custom_call.1} parent=1 // pred_check
      _
    $region3: #{tpu_custom_call.1} parent=1 // pred_check_branch
      %31 = sbr.rel (0) target = $region5
    $region4: #{tpu_custom_call.1} parent=1 // pred_region
      %s33 = ssub.s32 256, 256
      %34 = vsyncadd [#allocation5], %s33
      %s35 = sshll.u32 [#allocation4], 4
      %s36 = int_to_ptr.vmem [resolvable:$true] %s35
      %41 = dma.hbm_to_vmem [thread:$0]  %s0, 256, %s36, [#allocation5], 128, 128, 8
    $region5: #{tpu_custom_call.1} parent=1 // pred_fallthru
      _
    // Predicated region
    $region6: #{tpu_custom_call.1} parent=1 // pred_check
      _
    $region7: #{tpu_custom_call.1} parent=1 // pred_check_branch
      %43 = sbr.rel (0) target = $region9
    $region8: #{tpu_custom_call.1} parent=1 // pred_region
      %s45 = ssub.s32 256, 256
      %46 = vsyncadd [#allocation7], %s45
      %s47 = sshll.u32 [#allocation6], 4
      %s48 = int_to_ptr.vmem [resolvable:$true] %s47
      %53 = dma.hbm_to_vmem [thread:$0]  %s1, 256, %s48, [#allocation7], 64, 64, 4
    $region9: #{tpu_custom_call.1} parent=1 // pred_fallthru
      _
    // Predicated region
    $region10: #{tpu_custom_call.1} parent=1 // pred_check
      _
    $region11: #{tpu_custom_call.1} parent=1 // pred_check_branch
      %55 = sbr.rel (0) target = $region13
    $region12: #{tpu_custom_call.1} parent=1 // pred_region
      %s57 = ssub.s32 16, 16
      %58 = vsyncadd [#allocation7], %s57
      %s60 = sshll.u32 [#allocation8], 4
      %s61 = int_to_ptr.vmem [resolvable:$true] %s60
      %63 = dma.hbm_to_vmem [thread:$0]  %s2, 16, %s61, [#allocation7]
    $region13: #{tpu_custom_call.1} parent=1 // pred_fallthru
      _
    // Predicated region
    $region14: #{tpu_custom_call.1} parent=1 // pred_check
      _
    $region15: #{tpu_custom_call.1} parent=1 // pred_check_branch
      %65 = sbr.rel (0) target = $region17
    $region16: #{tpu_custom_call.1} parent=1 // pred_region
      _
    $region17: #{tpu_custom_call.1} parent=1 // pred_fallthru
      _
    // Predicated region
    $region18: #{tpu_custom_call.1} parent=1 // pred_check
      _
    $region19: #{tpu_custom_call.1} parent=1 // pred_check_branch
      %67 = sbr.rel (0) target = $region21
    $region20: #{tpu_custom_call.1} parent=1 // pred_region
      _
    $region21: #{tpu_custom_call.1} parent=1 // pred_fallthru
      _
    // Predicated region
    $region22: #{tpu_custom_call.1} parent=1 // pred_check
      _
    $region23: #{tpu_custom_call.1} parent=1 // pred_check_branch
      %69 = sbr.rel (0) target = $region25
    $region24: #{tpu_custom_call.1} parent=1 // pred_region
      _
    $region25: #{tpu_custom_call.1} parent=1 // pred_fallthru
      _
    // Predicated region
    $region26: #{tpu_custom_call.1} parent=1 // pred_check
      _
    $region27: #{tpu_custom_call.1} parent=1 // pred_check_branch
      %71 = sbr.rel (0) target = $region29
    $region28: #{tpu_custom_call.1} parent=1 // pred_region
      _
    $region29: #{tpu_custom_call.1} parent=1 // pred_fallthru
      _
    // Predicated region
    $region30: #{tpu_custom_call.1} parent=1 // pred_check
      _
    $region31: #{tpu_custom_call.1} parent=1 // pred_check_branch
      %73 = sbr.rel (0) target = $region33
    $region32: #{tpu_custom_call.1} parent=1 // pred_region
      _
    $region33: #{tpu_custom_call.1} parent=1 // pred_fallthru
      _
    // Predicated region
    $region34: #{tpu_custom_call.1} parent=1 // pred_check
      _
    $region35: #{tpu_custom_call.1} parent=1 // pred_check_branch
      %75 = sbr.rel (0) target = $region37
    $region36: #{tpu_custom_call.1} parent=1 // pred_region
      _
    $region37: #{tpu_custom_call.1} parent=1 // pred_fallthru
      _
    // Predicated region
    $region38: #{tpu_custom_call.1} parent=1 // pred_check
      _
    $region39: #{tpu_custom_call.1} parent=1 // pred_check_branch
      %77 = sbr.rel (0) target = $region41
    $region40: #{tpu_custom_call.1} parent=1 // pred_region
      _
    $region41: #{tpu_custom_call.1} parent=1 // pred_fallthru
      _
    // Predicated region
    $region42: #{tpu_custom_call.1} parent=1 // pred_check
      _
    $region43: #{tpu_custom_call.1} parent=1 // pred_check_branch
      %79 = sbr.rel (0) target = $region45
    $region44: #{tpu_custom_call.1} parent=1 // pred_region
      _
    $region45: #{tpu_custom_call.1} parent=1 // pred_fallthru
      _
    // Predicated region
    $region46: #{tpu_custom_call.1} parent=1 // pred_check
      _
    $region47: #{tpu_custom_call.1} parent=1 // pred_check_branch
      %81 = sbr.rel (0) target = $region49
    $region48: #{tpu_custom_call.1} parent=1 // pred_region
      _
    $region49: #{tpu_custom_call.1} parent=1 // pred_fallthru
      _
    // Predicated region
    $region50: #{tpu_custom_call.1} parent=1 // pred_check
      _
    $region51: #{tpu_custom_call.1} parent=1 // pred_check_branch
      %83 = sbr.rel (0) target = $region53
    $region52: #{tpu_custom_call.1} parent=1 // pred_region
      _
    $region53: #{tpu_custom_call.1} parent=1 // pred_fallthru
      _
    // Predicated region
    $region54: #{tpu_custom_call.1} parent=1 // pred_check
      _
    $region55: #{tpu_custom_call.1} parent=1 // pred_check_branch
      %85 = sbr.rel (0) target = $region57
    $region56: #{tpu_custom_call.1} parent=1 // pred_region
      _
    $region57: #{tpu_custom_call.1} parent=1 // pred_fallthru
      _
    // Predicated region
    $region58: #{tpu_custom_call.1} parent=1 // pred_check
      _
    $region59: #{tpu_custom_call.1} parent=1 // pred_check_branch
      %87 = sbr.rel (0) target = $region61
    $region60: #{tpu_custom_call.1} parent=1 // pred_region
      _
    $region61: #{tpu_custom_call.1} parent=1 // pred_fallthru
      _
    // Predicated region
    $region62: #{tpu_custom_call.1} parent=1 // pred_check
      _
    $region63: #{tpu_custom_call.1} parent=1 // pred_check_branch
      %89 = sbr.rel (0) target = $region65
    $region64: #{tpu_custom_call.1} parent=1 // pred_region
      _
    $region65: #{tpu_custom_call.1} parent=1 // pred_fallthru
      _
    // Predicated region
    $region66: #{tpu_custom_call.1} parent=1 // pred_check
      _
    $region67: #{tpu_custom_call.1} parent=1 // pred_check_branch
      %91 = sbr.rel (0) target = $region69
    $region68: #{tpu_custom_call.1} parent=1 // pred_region
      _
    $region69: #{tpu_custom_call.1} parent=1 // pred_fallthru
      _
    // Predicated region
    $region70: #{tpu_custom_call.1} parent=1 // pred_check
      _
    $region71: #{tpu_custom_call.1} parent=1 // pred_check_branch
      %93 = sbr.rel (0) target = $region73
    $region72: #{tpu_custom_call.1} parent=1 // pred_region
      %94 = dma.done [#allocation5], 256
    $region73: #{tpu_custom_call.1} parent=1 // pred_fallthru
      _
    // Predicated region
    $region74: #{tpu_custom_call.1} parent=1 // pred_check
      _
    $region75: #{tpu_custom_call.1} parent=1 // pred_check_branch
      %96 = sbr.rel (0) target = $region77
    $region76: #{tpu_custom_call.1} parent=1 // pred_region
      %97 = dma.done [#allocation7], 256
    $region77: #{tpu_custom_call.1} parent=1 // pred_fallthru
      _
    // Predicated region
    $region78: #{tpu_custom_call.1} parent=1 // pred_check
      _
    $region79: #{tpu_custom_call.1} parent=1 // pred_check_branch
      %99 = sbr.rel (0) target = $region81
    $region80: #{tpu_custom_call.1} parent=1 // pred_region
      %100 = dma.done [#allocation7], 16
    $region81: #{tpu_custom_call.1} parent=1 // pred_fallthru
      _
    %v102 = vld [vmem:[#allocation4] sm:$0xff]
    %v103 = vld [vmem:[#allocation4 + $0x8] sm:$0xff]
    %v104 = vpack.c.bf16 %v103, %v102
    %v105 = vld [vmem:[#allocation6] sm:$0xf]
    %v106 = vld [vmem:[#allocation6 + $0x4] sm:$0xf]
    %v107 = vld [vmem:[#allocation6 + $0x8] sm:$0xf]
    %v108 = vld [vmem:[#allocation6 + $0xc] sm:$0xf]
    %v109 = vld [vmem:[#allocation8] sm:$0x1]
    %v111 = vlaneseq
    %v112 = vshrl.u32 %v111, 7
    %v113 = vsub.s32 0, %v112
    %v114 = vrot.slane %v109, %v113
    %v120 = vunpack.c.l.b16 %v105
    %v121 = vunpack.c.l.b16 %v106
    %v122 = vunpack.c.l.b16 %v107
    %v123 = vunpack.c.l.b16 %v108
    %v124 = vpack.c.b16 %v121, %v120
    %v125 = vpack.c.b16 %v123, %v122
    %vm128 = vcmask 261120
    %v130 = vsel %vm128, %v104, 0
    %132 = vmatprep.subr.bf16.mxu0 0
    %133 = vmatpush1.bf16.msra.mxu0 %v124
    %134 = vmatprep.subr.bf16.mxu0 0
    %135 = vmatpush1.bf16.msra.mxu0 %v125
    %136 = vmatprep.subr.bf16.mxu0 0
    %137 = vmatpush1.bf16.msra.mxu0 0
    %138 = vmatprep.subr.bf16.mxu0 0
    %139 = vmatpush1.bf16.msra.mxu0 0
    %140 = vmatprep.subr.bf16.mxu0 0
    %141 = vmatpush1.bf16.msra.mxu0 0
    %142 = vmatprep.subr.bf16.mxu0 0
    %143 = vmatpush1.bf16.msra.mxu0 0
    %144 = vmatprep.subr.bf16.mxu0 0
    %145 = vmatpush1.bf16.msra.mxu0 0
    %146 = vmatprep.subr.bf16.mxu0 0
    %147 = vmatpush1.bf16.msra.mxu0 0
    %148 = vmatprep.subr.bf16.mxu0 0
    %149 = vmatpush1.bf16.msra.mxu0 0
    %150 = vmatprep.subr.bf16.mxu0 0
    %151 = vmatpush1.bf16.msra.mxu0 0
    %152 = vmatprep.subr.bf16.mxu0 0
    %153 = vmatpush1.bf16.msra.mxu0 0
    %154 = vmatprep.subr.bf16.mxu0 0
    %155 = vmatpush1.bf16.msra.mxu0 0
    %156 = vmatprep.subr.bf16.mxu0 0
    %157 = vmatpush1.bf16.msra.mxu0 0
    %158 = vmatprep.subr.bf16.mxu0 0
    %159 = vmatpush1.bf16.msra.mxu0 0
    %160 = vmatprep.subr.bf16.mxu0 0
    %161 = vmatpush1.bf16.msra.mxu0 0
    %162 = vmatprep.subr.bf16.mxu0 0
    %163 = vmatpush1.bf16.msra.mxu0 0
    %164 = vmatprep.mubr.bf16.mxu0 0
    %165 = vmatmul.mubr.bf16.gmra.mrb[0].mxu0 %v130
    %v166 = vpop.f32.mrb[0].mxu0
    %v167 = vadd.f32 %v114, %v166
    %v168 = vpop.f32.mrb[0].mxu0
    %v169 = vpop.f32.mrb[0].mxu0
    %v170 = vadd.f32 %v114, %v169
    %v171 = vpop.f32.mrb[0].mxu0
    %172 = vdwg.mxu0
    %173 = vadd.xlane.f32.xlu0 %v167
    %v174 = vpop.xlane.xlu0 %173
    %175 = vadd.xlane.f32.xlu0 %v170
    %v176 = vpop.xlane.xlu0 %175
    %v177 = vrcp.pop 128.0
    %v178 = vmul.f32 %v174, %v177
    %v179 = vmul.f32 %v176, %v177
    %v180 = vmul.f32 %v167, %v167
    %v181 = vmul.f32 %v170, %v170
    %182 = vadd.xlane.f32.xlu0 %v180
    %v183 = vpop.xlane.xlu0 %182
    %184 = vadd.xlane.f32.xlu0 %v181
    %v185 = vpop.xlane.xlu0 %184
    %v186 = vmul.f32 %v183, %v177
    %v187 = vmul.f32 %v185, %v177
    %v188 = vmul.f32 %v178, %v178
    %v189 = vmul.f32 %v179, %v179
    %v190 = vsub.f32 %v186, %v188
    %v191 = vsub.f32 %v187, %v189
    %v192 = vmax.f32 %v190, 0.0
    %v193 = vmax.f32 %v191, 0.0
    %v194 = vsub.f32 %v167, %v178
    %v195 = vsub.f32 %v170, %v179
    %v196 = vadd.f32 %v192, 1e-05
    %v197 = vadd.f32 %v193, 1e-05
    %v198 = vrsqrt.pop %v196
    %v199 = vrsqrt.pop %v197
    %v200 = vmul.f32 %v194, %v198
    %v201 = vmul.f32 %v195, %v199
    %v202 = vld [vmem:[%s3] sm:$0x1]
    %v204 = vlaneseq
    %v205 = vshrl.u32 %v204, 7
    %v206 = vsub.s32 0, %v205
    %v207 = vrot.slane %v202, %v206
    %v209 = vmul.f32 %v200, %v207
    %v210 = vmul.f32 %v201, %v207
    %v211 = vld [vmem:[%s4] sm:$0x1]
    %v213 = vlaneseq
    %v214 = vshrl.u32 %v213, 7
    %v215 = vsub.s32 0, %v214
    %v216 = vrot.slane %v211, %v215
    %v218 = vadd.f32 %v209, %v216
    %v219 = vadd.f32 %v210, %v216
    %v220 = vtanh.pop %v218
    %v221 = vtanh.pop %v219
    %v222 = vpack.c.bf16 %v221, %v220
    %v223 = vld [vmem:[%s5] sm:$0xf]
    %v224 = vld [vmem:[%s5 + $0x4] sm:$0xf]
    %v225 = vld [vmem:[%s5 + $0x8] sm:$0xf]
    %v226 = vld [vmem:[%s5 + $0xc] sm:$0xf]
    %v227 = vld [vmem:[%s5 + $0x10] sm:$0xf]
    %v228 = vld [vmem:[%s5 + $0x14] sm:$0xf]
    %v229 = vld [vmem:[%s5 + $0x18] sm:$0xf]
    %v230 = vld [vmem:[%s5 + $0x1c] sm:$0xf]
    %v231 = vld [vmem:[%s5 + $0x20] sm:$0xf]
    %v232 = vld [vmem:[%s5 + $0x24] sm:$0xf]
    %v233 = vld [vmem:[%s5 + $0x28] sm:$0xf]
    %v234 = vld [vmem:[%s5 + $0x2c] sm:$0xf]
    %v235 = vld [vmem:[%s5 + $0x30] sm:$0xf]
    %v236 = vld [vmem:[%s5 + $0x34] sm:$0xf]
    %v237 = vld [vmem:[%s5 + $0x38] sm:$0xf]
    %v238 = vld [vmem:[%s5 + $0x3c] sm:$0xf]
    %v239 = vld [vmem:[%s6] sm:$0x1]
    %v241 = vlaneseq
    %v242 = vshrl.u32 %v241, 7
    %v243 = vsub.s32 0, %v242
    %v244 = vrot.slane %v239, %v243
    %v262 = vunpack.c.l.b16 %v223
    %v263 = vunpack.c.l.b16 %v224
    %v264 = vunpack.c.l.b16 %v225
    %v265 = vunpack.c.l.b16 %v226
    %v266 = vunpack.c.l.b16 %v227
    %v267 = vunpack.c.l.b16 %v228
    %v268 = vunpack.c.l.b16 %v229
    %v269 = vunpack.c.l.b16 %v230
    %v270 = vunpack.c.l.b16 %v231
    %v271 = vunpack.c.l.b16 %v232
    %v272 = vunpack.c.l.b16 %v233
    %v273 = vunpack.c.l.b16 %v234
    %v274 = vunpack.c.l.b16 %v235
    %v275 = vunpack.c.l.b16 %v236
    %v276 = vunpack.c.l.b16 %v237
    %v277 = vunpack.c.l.b16 %v238
    %v278 = vpack.c.b16 %v263, %v262
    %v279 = vpack.c.b16 %v265, %v264
    %v280 = vpack.c.b16 %v267, %v266
    %v281 = vpack.c.b16 %v269, %v268
    %v282 = vpack.c.b16 %v271, %v270
    %v283 = vpack.c.b16 %v273, %v272
    %v284 = vpack.c.b16 %v275, %v274
    %v285 = vpack.c.b16 %v277, %v276
    %294 = vmatprep.subr.bf16.mxu0 0
    %295 = vmatpush1.bf16.msra.mxu0 %v278
    %296 = vmatprep.subr.bf16.mxu0 0
    %297 = vmatpush1.bf16.msra.mxu0 %v279
    %298 = vmatprep.subr.bf16.mxu0 0
    %299 = vmatpush1.bf16.msra.mxu0 %v280
    %300 = vmatprep.subr.bf16.mxu0 0
    %301 = vmatpush1.bf16.msra.mxu0 %v281
    %302 = vmatprep.subr.bf16.mxu0 0
    %303 = vmatpush1.bf16.msra.mxu0 %v282
    %304 = vmatprep.subr.bf16.mxu0 0
    %305 = vmatpush1.bf16.msra.mxu0 %v283
    %306 = vmatprep.subr.bf16.mxu0 0
    %307 = vmatpush1.bf16.msra.mxu0 %v284
    %308 = vmatprep.subr.bf16.mxu0 0
    %309 = vmatpush1.bf16.msra.mxu0 %v285
    %310 = vmatprep.subr.bf16.mxu0 0
    %311 = vmatpush1.bf16.msra.mxu0 0
    %312 = vmatprep.subr.bf16.mxu0 0
    %313 = vmatpush1.bf16.msra.mxu0 0
    %314 = vmatprep.subr.bf16.mxu0 0
    %315 = vmatpush1.bf16.msra.mxu0 0
    %316 = vmatprep.subr.bf16.mxu0 0
    %317 = vmatpush1.bf16.msra.mxu0 0
    %318 = vmatprep.subr.bf16.mxu0 0
    %319 = vmatpush1.bf16.msra.mxu0 0
    %320 = vmatprep.subr.bf16.mxu0 0
    %321 = vmatpush1.bf16.msra.mxu0 0
    %322 = vmatprep.subr.bf16.mxu0 0
    %323 = vmatpush1.bf16.msra.mxu0 0
    %324 = vmatprep.subr.bf16.mxu0 0
    %325 = vmatpush1.bf16.msra.mxu0 0
    %326 = vmatprep.mubr.bf16.mxu0 0
    %327 = vmatmul.mubr.bf16.gmra.mrb[0].mxu0 %v222
    %v328 = vpop.f32.mrb[0].mxu0
    %v329 = vadd.f32 %v244, %v328
    %v330 = vpop.f32.mrb[0].mxu0
    %v331 = vpop.f32.mrb[0].mxu0
    %v332 = vadd.f32 %v244, %v331
    %v333 = vpop.f32.mrb[0].mxu0
    %334 = vdwg.mxu0
    %v335 = vmax.f32 %v329, 0.0
    %v336 = vmax.f32 %v332, 0.0
    %v337 = vpack.c.bf16 %v336, %v335
    %v338 = vld [vmem:[%s7] sm:$0xf]
    %v339 = vld [vmem:[%s7 + $0x4] sm:$0xf]
    %v340 = vld [vmem:[%s7 + $0x8] sm:$0xf]
    %v341 = vld [vmem:[%s7 + $0xc] sm:$0xf]
    %v342 = vld [vmem:[%s7 + $0x10] sm:$0xf]
    %v343 = vld [vmem:[%s7 + $0x14] sm:$0xf]
    %v344 = vld [vmem:[%s7 + $0x18] sm:$0xf]
    %v345 = vld [vmem:[%s7 + $0x1c] sm:$0xf]
    %v346 = vld [vmem:[%s7 + $0x20] sm:$0xf]
    %v347 = vld [vmem:[%s7 + $0x24] sm:$0xf]
    %v348 = vld [vmem:[%s7 + $0x28] sm:$0xf]
    %v349 = vld [vmem:[%s7 + $0x2c] sm:$0xf]
    %v350 = vld [vmem:[%s7 + $0x30] sm:$0xf]
    %v351 = vld [vmem:[%s7 + $0x34] sm:$0xf]
    %v352 = vld [vmem:[%s7 + $0x38] sm:$0xf]
    %v353 = vld [vmem:[%s7 + $0x3c] sm:$0xf]
    %v354 = vld [vmem:[#allocation2] sm:$0x1]
    %v356 = vlaneseq
    %v357 = vshrl.u32 %v356, 7
    %v358 = vsub.s32 0, %v357
    %v359 = vrot.slane %v354, %v358
    %v377 = vunpack.c.l.b16 %v338
    %v378 = vunpack.c.l.b16 %v339
    %v379 = vunpack.c.l.b16 %v340
    %v380 = vunpack.c.l.b16 %v341
    %v381 = vunpack.c.l.b16 %v342
    %v382 = vunpack.c.l.b16 %v343
    %v383 = vunpack.c.l.b16 %v344
    %v384 = vunpack.c.l.b16 %v345
    %v385 = vunpack.c.l.b16 %v346
    %v386 = vunpack.c.l.b16 %v347
    %v387 = vunpack.c.l.b16 %v348
    %v388 = vunpack.c.l.b16 %v349
    %v389 = vunpack.c.l.b16 %v350
    %v390 = vunpack.c.l.b16 %v351
    %v391 = vunpack.c.l.b16 %v352
    %v392 = vunpack.c.l.b16 %v353
    %v393 = vpack.c.b16 %v378, %v377
    %v394 = vpack.c.b16 %v380, %v379
    %v395 = vpack.c.b16 %v382, %v381
    %v396 = vpack.c.b16 %v384, %v383
    %v397 = vpack.c.b16 %v386, %v385
    %v398 = vpack.c.b16 %v388, %v387
    %v399 = vpack.c.b16 %v390, %v389
    %v400 = vpack.c.b16 %v392, %v391
    %409 = vmatprep.subr.bf16.mxu0 0
    %410 = vmatpush1.bf16.msra.mxu0 %v393
    %411 = vmatprep.subr.bf16.mxu0 0
    %412 = vmatpush1.bf16.msra.mxu0 %v394
    %413 = vmatprep.subr.bf16.mxu0 0
    %414 = vmatpush1.bf16.msra.mxu0 %v395
    %415 = vmatprep.subr.bf16.mxu0 0
    %416 = vmatpush1.bf16.msra.mxu0 %v396
    %417 = vmatprep.subr.bf16.mxu0 0
    %418 = vmatpush1.bf16.msra.mxu0 %v397
    %419 = vmatprep.subr.bf16.mxu0 0
    %420 = vmatpush1.bf16.msra.mxu0 %v398
    %421 = vmatprep.subr.bf16.mxu0 0
    %422 = vmatpush1.bf16.msra.mxu0 %v399
    %423 = vmatprep.subr.bf16.mxu0 0
    %424 = vmatpush1.bf16.msra.mxu0 %v400
    %425 = vmatprep.subr.bf16.mxu0 0
    %426 = vmatpush1.bf16.msra.mxu0 0
    %427 = vmatprep.subr.bf16.mxu0 0
    %428 = vmatpush1.bf16.msra.mxu0 0
    %429 = vmatprep.subr.bf16.mxu0 0
    %430 = vmatpush1.bf16.msra.mxu0 0
    %431 = vmatprep.subr.bf16.mxu0 0
    %432 = vmatpush1.bf16.msra.mxu0 0
    %433 = vmatprep.subr.bf16.mxu0 0
    %434 = vmatpush1.bf16.msra.mxu0 0
    %435 = vmatprep.subr.bf16.mxu0 0
    %436 = vmatpush1.bf16.msra.mxu0 0
    %437 = vmatprep.subr.bf16.mxu0 0
    %438 = vmatpush1.bf16.msra.mxu0 0
    %439 = vmatprep.subr.bf16.mxu0 0
    %440 = vmatpush1.bf16.msra.mxu0 0
    %441 = vmatprep.mubr.bf16.mxu0 0
    %442 = vmatmul.mubr.bf16.gmra.mrb[0].mxu0 %v337
    %v443 = vpop.f32.mrb[0].mxu0
    %v444 = vadd.f32 %v359, %v443
    %v445 = vpop.f32.mrb[0].mxu0
    %v446 = vpop.f32.mrb[0].mxu0
    %v447 = vadd.f32 %v359, %v446
    %v448 = vpop.f32.mrb[0].mxu0
    %449 = vdwg.mxu0
    %vm450 = vcmask 7168
    %451 = vst.msk [vmem:[%s17] sm:$0xff] %vm450, %v444
    %452 = vst.msk [vmem:[%s17 + $0x8] sm:$0xff] %vm450, %v447
    %v453 = vld [vmem:[%s9] sm:$0xf]
    %v454 = vld [vmem:[%s9 + $0x4] sm:$0xf]
    %v455 = vld [vmem:[%s9 + $0x8] sm:$0xf]
    %v456 = vld [vmem:[%s9 + $0xc] sm:$0xf]
    %v457 = vld [vmem:[%s10] sm:$0x1]
    %v459 = vlaneseq
    %v460 = vshrl.u32 %v459, 7
    %v461 = vsub.s32 0, %v460
    %v462 = vrot.slane %v457, %v461
    %v468 = vunpack.c.l.b16 %v453
    %v469 = vunpack.c.l.b16 %v454
    %v470 = vunpack.c.l.b16 %v455
    %v471 = vunpack.c.l.b16 %v456
    %v472 = vpack.c.b16 %v469, %v468
    %v473 = vpack.c.b16 %v471, %v470
    %476 = vmatprep.subr.bf16.mxu0 0
    %477 = vmatpush1.bf16.msra.mxu0 %v472
    %478 = vmatprep.subr.bf16.mxu0 0
    %479 = vmatpush1.bf16.msra.mxu0 %v473
    %480 = vmatprep.subr.bf16.mxu0 0
    %481 = vmatpush1.bf16.msra.mxu0 0
    %482 = vmatprep.subr.bf16.mxu0 0
    %483 = vmatpush1.bf16.msra.mxu0 0
    %484 = vmatprep.subr.bf16.mxu0 0
    %485 = vmatpush1.bf16.msra.mxu0 0
    %486 = vmatprep.subr.bf16.mxu0 0
    %487 = vmatpush1.bf16.msra.mxu0 0
    %488 = vmatprep.subr.bf16.mxu0 0
    %489 = vmatpush1.bf16.msra.mxu0 0
    %490 = vmatprep.subr.bf16.mxu0 0
    %491 = vmatpush1.bf16.msra.mxu0 0
    %492 = vmatprep.subr.bf16.mxu0 0
    %493 = vmatpush1.bf16.msra.mxu0 0
    %494 = vmatprep.subr.bf16.mxu0 0
    %495 = vmatpush1.bf16.msra.mxu0 0
    %496 = vmatprep.subr.bf16.mxu0 0
    %497 = vmatpush1.bf16.msra.mxu0 0
    %498 = vmatprep.subr.bf16.mxu0 0
    %499 = vmatpush1.bf16.msra.mxu0 0
    %500 = vmatprep.subr.bf16.mxu0 0
    %501 = vmatpush1.bf16.msra.mxu0 0
    %502 = vmatprep.subr.bf16.mxu0 0
    %503 = vmatpush1.bf16.msra.mxu0 0
    %504 = vmatprep.subr.bf16.mxu0 0
    %505 = vmatpush1.bf16.msra.mxu0 0
    %506 = vmatprep.subr.bf16.mxu0 0
    %507 = vmatpush1.bf16.msra.mxu0 0
    %508 = vmatprep.mubr.bf16.mxu0 0
    %509 = vmatmul.mubr.bf16.gmra.mrb[0].mxu0 %v130
    %v510 = vpop.f32.mrb[0].mxu0
    %v511 = vadd.f32 %v462, %v510
    %v512 = vpop.f32.mrb[0].mxu0
    %v513 = vpop.f32.mrb[0].mxu0
    %v514 = vadd.f32 %v462, %v513
    %v515 = vpop.f32.mrb[0].mxu0
    %516 = vdwg.mxu0
    %517 = vadd.xlane.f32.xlu0 %v511
    %v518 = vpop.xlane.xlu0 %517
    %519 = vadd.xlane.f32.xlu0 %v514
    %v520 = vpop.xlane.xlu0 %519
    %v521 = vmul.f32 %v518, %v177
    %v522 = vmul.f32 %v520, %v177
    %v523 = vmul.f32 %v511, %v511
    %v524 = vmul.f32 %v514, %v514
    %525 = vadd.xlane.f32.xlu0 %v523
    %v526 = vpop.xlane.xlu0 %525
    %527 = vadd.xlane.f32.xlu0 %v524
    %v528 = vpop.xlane.xlu0 %527
    %v529 = vmul.f32 %v526, %v177
    %v530 = vmul.f32 %v528, %v177
    %v531 = vmul.f32 %v521, %v521
    %v532 = vmul.f32 %v522, %v522
    %v533 = vsub.f32 %v529, %v531
    %v534 = vsub.f32 %v530, %v532
    %v535 = vmax.f32 %v533, 0.0
    %v536 = vmax.f32 %v534, 0.0
    %v537 = vsub.f32 %v511, %v521
    %v538 = vsub.f32 %v514, %v522
    %v539 = vadd.f32 %v535, 1e-05
    %v540 = vadd.f32 %v536, 1e-05
    %v541 = vrsqrt.pop %v539
    %v542 = vrsqrt.pop %v540
    %v543 = vmul.f32 %v537, %v541
    %v544 = vmul.f32 %v538, %v542
    %v545 = vld [vmem:[%s11] sm:$0x1]
    %v547 = vlaneseq
    %v548 = vshrl.u32 %v547, 7
    %v549 = vsub.s32 0, %v548
    %v550 = vrot.slane %v545, %v549
    %v552 = vmul.f32 %v543, %v550
    %v553 = vmul.f32 %v544, %v550
    %v554 = vld [vmem:[%s12] sm:$0x1]
    %v556 = vlaneseq
    %v557 = vshrl.u32 %v556, 7
    %v558 = vsub.s32 0, %v557
    %v559 = vrot.slane %v554, %v558
    %v561 = vadd.f32 %v552, %v559
    %v562 = vadd.f32 %v553, %v559
    %v563 = vtanh.pop %v561
    %v564 = vtanh.pop %v562
    %v565 = vpack.c.bf16 %v564, %v563
    %v566 = vld [vmem:[%s13] sm:$0xf]
    %v567 = vld [vmem:[%s13 + $0x4] sm:$0xf]
    %v568 = vld [vmem:[%s13 + $0x8] sm:$0xf]
    %v569 = vld [vmem:[%s13 + $0xc] sm:$0xf]
    %v570 = vld [vmem:[%s13 + $0x10] sm:$0xf]
    %v571 = vld [vmem:[%s13 + $0x14] sm:$0xf]
    %v572 = vld [vmem:[%s13 + $0x18] sm:$0xf]
    %v573 = vld [vmem:[%s13 + $0x1c] sm:$0xf]
    %v574 = vld [vmem:[%s13 + $0x20] sm:$0xf]
    %v575 = vld [vmem:[%s13 + $0x24] sm:$0xf]
    %v576 = vld [vmem:[%s13 + $0x28] sm:$0xf]
    %v577 = vld [vmem:[%s13 + $0x2c] sm:$0xf]
    %v578 = vld [vmem:[%s13 + $0x30] sm:$0xf]
    %v579 = vld [vmem:[%s13 + $0x34] sm:$0xf]
    %v580 = vld [vmem:[%s13 + $0x38] sm:$0xf]
    %v581 = vld [vmem:[%s13 + $0x3c] sm:$0xf]
    %v582 = vld [vmem:[%s14] sm:$0x1]
    %v584 = vlaneseq
    %v585 = vshrl.u32 %v584, 7
    %v586 = vsub.s32 0, %v585
    %v587 = vrot.slane %v582, %v586
    %v605 = vunpack.c.l.b16 %v566
    %v606 = vunpack.c.l.b16 %v567
    %v607 = vunpack.c.l.b16 %v568
    %v608 = vunpack.c.l.b16 %v569
    %v609 = vunpack.c.l.b16 %v570
    %v610 = vunpack.c.l.b16 %v571
    %v611 = vunpack.c.l.b16 %v572
    %v612 = vunpack.c.l.b16 %v573
    %v613 = vunpack.c.l.b16 %v574
    %v614 = vunpack.c.l.b16 %v575
    %v615 = vunpack.c.l.b16 %v576
    %v616 = vunpack.c.l.b16 %v577
    %v617 = vunpack.c.l.b16 %v578
    %v618 = vunpack.c.l.b16 %v579
    %v619 = vunpack.c.l.b16 %v580
    %v620 = vunpack.c.l.b16 %v581
    %v621 = vpack.c.b16 %v606, %v605
    %v622 = vpack.c.b16 %v608, %v607
    %v623 = vpack.c.b16 %v610, %v609
    %v624 = vpack.c.b16 %v612, %v611
    %v625 = vpack.c.b16 %v614, %v613
    %v626 = vpack.c.b16 %v616, %v615
    %v627 = vpack.c.b16 %v618, %v617
    %v628 = vpack.c.b16 %v620, %v619
    %637 = vmatprep.subr.bf16.mxu0 0
    %638 = vmatpush1.bf16.msra.mxu0 %v621
    %639 = vmatprep.subr.bf16.mxu0 0
    %640 = vmatpush1.bf16.msra.mxu0 %v622
    %641 = vmatprep.subr.bf16.mxu0 0
    %642 = vmatpush1.bf16.msra.mxu0 %v623
    %643 = vmatprep.subr.bf16.mxu0 0
    %644 = vmatpush1.bf16.msra.mxu0 %v624
    %645 = vmatprep.subr.bf16.mxu0 0
    %646 = vmatpush1.bf16.msra.mxu0 %v625
    %647 = vmatprep.subr.bf16.mxu0 0
    %648 = vmatpush1.bf16.msra.mxu0 %v626
    %649 = vmatprep.subr.bf16.mxu0 0
    %650 = vmatpush1.bf16.msra.mxu0 %v627
    %651 = vmatprep.subr.bf16.mxu0 0
    %652 = vmatpush1.bf16.msra.mxu0 %v628
    %653 = vmatprep.subr.bf16.mxu0 0
    %654 = vmatpush1.bf16.msra.mxu0 0
    %655 = vmatprep.subr.bf16.mxu0 0
    %656 = vmatpush1.bf16.msra.mxu0 0
    %657 = vmatprep.subr.bf16.mxu0 0
    %658 = vmatpush1.bf16.msra.mxu0 0
    %659 = vmatprep.subr.bf16.mxu0 0
    %660 = vmatpush1.bf16.msra.mxu0 0
    %661 = vmatprep.subr.bf16.mxu0 0
    %662 = vmatpush1.bf16.msra.mxu0 0
    %663 = vmatprep.subr.bf16.mxu0 0
    %664 = vmatpush1.bf16.msra.mxu0 0
    %665 = vmatprep.subr.bf16.mxu0 0
    %666 = vmatpush1.bf16.msra.mxu0 0
    %667 = vmatprep.subr.bf16.mxu0 0
    %668 = vmatpush1.bf16.msra.mxu0 0
    %669 = vmatprep.mubr.bf16.mxu0 0
    %670 = vmatmul.mubr.bf16.gmra.mrb[0].mxu0 %v565
    %v671 = vpop.f32.mrb[0].mxu0
    %v672 = vadd.f32 %v587, %v671
    %v673 = vpop.f32.mrb[0].mxu0
    %v674 = vpop.f32.mrb[0].mxu0
    %v675 = vadd.f32 %v587, %v674
    %v676 = vpop.f32.mrb[0].mxu0
    %677 = vdwg.mxu0
    %v678 = vmax.f32 %v672, 0.0
    %v679 = vmax.f32 %v675, 0.0
    %v680 = vpack.c.bf16 %v679, %v678
    %v681 = vld [vmem:[%s15] sm:$0xf]
    %v682 = vld [vmem:[%s15 + $0x4] sm:$0xf]
    %v683 = vld [vmem:[%s15 + $0x8] sm:$0xf]
    %v684 = vld [vmem:[%s15 + $0xc] sm:$0xf]
    %v685 = vld [vmem:[%s15 + $0x10] sm:$0xf]
    %v686 = vld [vmem:[%s15 + $0x14] sm:$0xf]
    %v687 = vld [vmem:[%s15 + $0x18] sm:$0xf]
    %v688 = vld [vmem:[%s15 + $0x1c] sm:$0xf]
    %v689 = vld [vmem:[%s15 + $0x20] sm:$0xf]
    %v690 = vld [vmem:[%s15 + $0x24] sm:$0xf]
    %v691 = vld [vmem:[%s15 + $0x28] sm:$0xf]
    %v692 = vld [vmem:[%s15 + $0x2c] sm:$0xf]
    %v693 = vld [vmem:[%s15 + $0x30] sm:$0xf]
    %v694 = vld [vmem:[%s15 + $0x34] sm:$0xf]
    %v695 = vld [vmem:[%s15 + $0x38] sm:$0xf]
    %v696 = vld [vmem:[%s15 + $0x3c] sm:$0xf]
    %v697 = vld [vmem:[#allocation3] sm:$0x1]
    %v699 = vlaneseq
    %v700 = vshrl.u32 %v699, 7
    %v701 = vsub.s32 0, %v700
    %v702 = vrot.slane %v697, %v701
    %v720 = vunpack.c.l.b16 %v681
    %v721 = vunpack.c.l.b16 %v682
    %v722 = vunpack.c.l.b16 %v683
    %v723 = vunpack.c.l.b16 %v684
    %v724 = vunpack.c.l.b16 %v685
    %v725 = vunpack.c.l.b16 %v686
    %v726 = vunpack.c.l.b16 %v687
    %v727 = vunpack.c.l.b16 %v688
    %v728 = vunpack.c.l.b16 %v689
    %v729 = vunpack.c.l.b16 %v690
    %v730 = vunpack.c.l.b16 %v691
    %v731 = vunpack.c.l.b16 %v692
    %v732 = vunpack.c.l.b16 %v693
    %v733 = vunpack.c.l.b16 %v694
    %v734 = vunpack.c.l.b16 %v695
    %v735 = vunpack.c.l.b16 %v696
    %v736 = vpack.c.b16 %v721, %v720
    %v737 = vpack.c.b16 %v723, %v722
    %v738 = vpack.c.b16 %v725, %v724
    %v739 = vpack.c.b16 %v727, %v726
    %v740 = vpack.c.b16 %v729, %v728
    %v741 = vpack.c.b16 %v731, %v730
    %v742 = vpack.c.b16 %v733, %v732
    %v743 = vpack.c.b16 %v735, %v734
    %752 = vmatprep.subr.bf16.mxu0 0
    %753 = vmatpush1.bf16.msra.mxu0 %v736
    %754 = vmatprep.subr.bf16.mxu0 0
    %755 = vmatpush1.bf16.msra.mxu0 %v737
    %756 = vmatprep.subr.bf16.mxu0 0
    %757 = vmatpush1.bf16.msra.mxu0 %v738
    %758 = vmatprep.subr.bf16.mxu0 0
    %759 = vmatpush1.bf16.msra.mxu0 %v739
    %760 = vmatprep.subr.bf16.mxu0 0
    %761 = vmatpush1.bf16.msra.mxu0 %v740
    %762 = vmatprep.subr.bf16.mxu0 0
    %763 = vmatpush1.bf16.msra.mxu0 %v741
    %764 = vmatprep.subr.bf16.mxu0 0
    %765 = vmatpush1.bf16.msra.mxu0 %v742
    %766 = vmatprep.subr.bf16.mxu0 0
    %767 = vmatpush1.bf16.msra.mxu0 %v743
    %768 = vmatprep.subr.bf16.mxu0 0
    %769 = vmatpush1.bf16.msra.mxu0 0
    %770 = vmatprep.subr.bf16.mxu0 0
    %771 = vmatpush1.bf16.msra.mxu0 0
    %772 = vmatprep.subr.bf16.mxu0 0
    %773 = vmatpush1.bf16.msra.mxu0 0
    %774 = vmatprep.subr.bf16.mxu0 0
    %775 = vmatpush1.bf16.msra.mxu0 0
    %776 = vmatprep.subr.bf16.mxu0 0
    %777 = vmatpush1.bf16.msra.mxu0 0
    %778 = vmatprep.subr.bf16.mxu0 0
    %779 = vmatpush1.bf16.msra.mxu0 0
    %780 = vmatprep.subr.bf16.mxu0 0
    %781 = vmatpush1.bf16.msra.mxu0 0
    %782 = vmatprep.subr.bf16.mxu0 0
    %783 = vmatpush1.bf16.msra.mxu0 0
    %784 = vmatprep.mubr.bf16.mxu0 0
    %785 = vmatmul.mubr.bf16.gmra.mrb[0].mxu0 %v680
    %v786 = vpop.f32.mrb[0].mxu0
    %v787 = vadd.f32 %v702, %v786
    %v788 = vpop.f32.mrb[0].mxu0
    %v789 = vpop.f32.mrb[0].mxu0
    %v790 = vadd.f32 %v702, %v789
    %v791 = vpop.f32.mrb[0].mxu0
    %792 = vdwg.mxu0
    %793 = vst.msk [vmem:[%s18] sm:$0xff] %vm450, %v787
    %794 = vst.msk [vmem:[%s18 + $0x8] sm:$0xff] %vm450, %v790
    // Predicated region
    $region82: #{tpu_custom_call.1} parent=1 // pred_check
      _
    $region83: #{tpu_custom_call.1} parent=1 // pred_check_branch
      %796 = sbr.rel (0) target = $region85
    $region84: #{tpu_custom_call.1} parent=1 // pred_region
      _
    $region85: #{tpu_custom_call.1} parent=1 // pred_fallthru
      _
    // Predicated region
    $region86: #{tpu_custom_call.1} parent=1 // pred_check
      _
    $region87: #{tpu_custom_call.1} parent=1 // pred_check_branch
      %798 = sbr.rel (0) target = $region89
    $region88: #{tpu_custom_call.1} parent=1 // pred_region
      _
    $region89: #{tpu_custom_call.1} parent=1 // pred_fallthru
      _
    // Predicated region
    $region90: #{tpu_custom_call.1} parent=1 // pred_check
      _
    $region91: #{tpu_custom_call.1} parent=1 // pred_check_branch
      %800 = sbr.rel (0) target = $region93
    $region92: #{tpu_custom_call.1} parent=1 // pred_region
      _
    $region93: #{tpu_custom_call.1} parent=1 // pred_fallthru
      _
    // Predicated region
    $region94: #{tpu_custom_call.1} parent=1 // pred_check
      _
    $region95: #{tpu_custom_call.1} parent=1 // pred_check_branch
      %802 = sbr.rel (0) target = $region97
    $region96: #{tpu_custom_call.1} parent=1 // pred_region
      _
    $region97: #{tpu_custom_call.1} parent=1 // pred_fallthru
      _
    %803 = vsyncpa [#allocation5], 1
    %804 = vsyncpa [#allocation7], 1

</llo_original>
